<compile_context>
chip_gen: v7x
topology: tpu7x:2x2x1
jax: 0.10.0
libtpu: 0.0.40
codegen_flags: <defaults>
</compile_context>

<pallas_src>
import math
import functools

import jax
import jax.numpy as jnp
from jax.experimental import pallas as pl
from jax.experimental.pallas import tpu as pltpu


def _sdpa_kernel(q_ref, k_ref, v_ref, ctx_ref, scores_ref,
                 m_sc, l_sc, acc_sc, *, inv_sqrt_dk):
    # q_ref: (G, tq, d_k), k_ref: (G, tk, d_k), v_ref: (G, tk, d_v)
    kv = pl.program_id(2)

    @pl.when(kv == 0)
    def _():
        m_sc[...] = jnp.full_like(m_sc, -jnp.inf)
        l_sc[...] = jnp.zeros_like(l_sc)
        acc_sc[...] = jnp.zeros_like(acc_sc)

    # Scale Q (G*tq*dk elements) instead of the scores tile (G*tq*tk elements).
    q = q_ref[...] * inv_sqrt_dk
    k = k_ref[...]
    v = v_ref[...]

    # Pre-scaled scores tile in f32: (G, tq, tk).  Batched contraction over d_k
    # directly (no K transpose / XLU relayout).
    s = jnp.einsum("gqd,gkd->gqk", q, k, preferred_element_type=jnp.float32)
    scores_ref[...] = s.astype(scores_ref.dtype)

    # Online softmax update over the key axis (dim=3 of the 4-D view), in f32.
    m_prev = m_sc[...]
    m_new = jnp.maximum(m_prev, jnp.max(s, axis=-1, keepdims=True))
    alpha = jnp.exp(m_prev - m_new)                     # EUP
    e = jnp.exp(s - m_new)                              # EUP
    l_sc[...] = alpha * l_sc[...] + jnp.sum(e, axis=-1, keepdims=True)
    acc_sc[...] = alpha * acc_sc[...] + jnp.einsum(
        "gqk,gkd->gqd", e.astype(v.dtype), v, preferred_element_type=jnp.float32)
    m_sc[...] = m_new

    @pl.when(kv == pl.num_programs(2) - 1)
    def _():
        # Exact normalization AFTER the PV matmul: only G*tq*dv elements.
        ctx_ref[...] = (acc_sc[...] / l_sc[...]).astype(ctx_ref.dtype)


def _round_up(x, m):
    return ((x + m - 1) // m) * m


def _vmem_limit_bytes():
    """Scoped VMEM limit sized for this chip (conservative 64 MiB fallback -> v7x-safe)."""
    try:
        cap = int(getattr(pltpu.get_tpu_info(), "vmem_capacity_bytes", 64 << 20))
    except Exception:
        cap = 64 << 20
    return min(96 << 20, (cap * 3) // 4)


def _footprint(g, tq, tk, dk, dv, in_bytes, sc_bytes, scores_bufs):
    """VMEM bytes for one grid step, matching real (sublane, lane) padded layout."""
    sub = 16 if in_bytes < 4 else 8          # sublane pack (bf16 packs 16 rows)
    dk_p = _round_up(dk, 128)
    dv_p = _round_up(dv, 128)
    tk_p = _round_up(tk, 128)
    tq_p = _round_up(tq, sub)
    tk_s = _round_up(tk, sub)
    # Pipelined (double-buffered) input/output blocks.
    blocks = 2 * (g * tq_p * dk_p * in_bytes       # Q
                  + g * tk_s * dk_p * in_bytes     # K
                  + g * tk_s * dv_p * in_bytes     # V
                  + g * tq_p * dv_p * in_bytes)    # context out
    blocks += scores_bufs * g * tq_p * tk_p * sc_bytes   # scores out
    # Single-buffered f32 scratch: running max, running denom (128-lane padded), acc.
    scratch = g * tq_p * (dv_p + 2 * 128) * 4
    # f32 softmax temporaries the compiler holds live (s, e, exp slack).
    temps = 3 * g * tq_p * tk_p * 4
    return blocks + scratch + temps


def _pick_tiles(BH, Lq, Lk, dk, dv, in_bytes, sc_bytes, vmem_limit):
    """Pick (G heads / step, tq query tile, tk key tile, deep-buffer scores?)."""
    budget = int(0.85 * vmem_limit)

    def pick_tile(L, cap=512):
        if L <= cap:
            return L
        for cand in (512, 256, 128):
            if L % cand == 0:
                return cand
        return L

    tq = pick_tile(Lq)
    tk = pick_tile(Lk)

    def fits(g, q_t, k_t, sbufs=2):
        return _footprint(g, q_t, k_t, dk, dv, in_bytes, sc_bytes, sbufs) <= budget

    # If a single head still does not fit, shrink the kv tile first, then tq,
    # with MXU-friendly floors (128) instead of collapsing to 8/16.
    while not fits(1, tq, tk) and tk % 2 == 0 and tk // 2 >= 128:
        tk //= 2
    while not fits(1, tq, tk) and tq % 2 == 0 and tq // 2 >= 128:
        tq //= 2

    # Keep >= 2 grid steps along a 'parallel' axis so both v7x TensorCores get work.
    if (Lq // tq) >= 2 or BH < 2:
        g_max = BH
    else:
        g_max = BH // 2

    g = 1
    for cand in sorted((d for d in range(1, BH + 1) if BH % d == 0), reverse=True):
        if cand <= g_max and fits(cand, tq, tk):
            g = cand
            break

    # Deeper buffering for the scores writeback only when it is lane-dense and
    # there is VMEM headroom for a 3-deep output pipeline.
    scores_buffered = (tk % 128 == 0) and fits(g, tq, tk, sbufs=3)
    return g, tq, tk, scores_buffered


def scaled_dot_product_attention(Q, K, V, attn_mask=None, res_att=None, *,
                                 d_k=None, scores_dtype=None):
    """Pallas implementation of ScaledDotProductAttention.forward.

    Q: [B, H, Lq, d_k], K: [B, H, Lk, d_k], V: [B, H, Lk, d_v]
    Returns (context [B, H, Lq, d_v], scores [B, H, Lq, Lk]).
    attn_mask / res_att are accepted for signature parity but unused (the reference
    module's masked_fill is not in-place, so the mask never affects its output).
    scores_dtype: optionally emit scores in bf16 to halve the dominant HBM writeback.
    """
    B, H, Lq, dk = Q.shape
    _, _, Lk, _ = K.shape
    dv = V.shape[-1]
    if d_k is None:
        d_k = dk
    if scores_dtype is None:
        scores_dtype = Q.dtype

    BH = B * H
    q = Q.reshape(BH, Lq, dk)
    k = K.reshape(BH, Lk, dk)
    v = V.reshape(BH, Lk, dv)

    vmem_limit = _vmem_limit_bytes()
    in_bytes = jnp.dtype(Q.dtype).itemsize
    sc_bytes = jnp.dtype(scores_dtype).itemsize
    G, tq, tk, scores_buffered = _pick_tiles(
        BH, Lq, Lk, dk, dv, in_bytes, sc_bytes, vmem_limit)

    kernel = functools.partial(_sdpa_kernel, inv_sqrt_dk=1.0 / math.sqrt(d_k))

    def build(deep_scores):
        scores_kwargs = {"pipeline_mode": pl.Buffered(3)} if deep_scores else {}
        return pl.pallas_call(
            kernel,
            out_shape=(
                jax.ShapeDtypeStruct((BH, Lq, dv), Q.dtype),
                jax.ShapeDtypeStruct((BH, Lq, Lk), scores_dtype),
            ),
            grid=(BH // G, Lq // tq, Lk // tk),
            in_specs=[
                pl.BlockSpec((G, tq, dk), lambda g, i, j: (g, i, 0)),
                pl.BlockSpec((G, tk, dk), lambda g, i, j: (g, j, 0)),
                pl.BlockSpec((G, tk, dv), lambda g, i, j: (g, j, 0)),
            ],
            out_specs=(
                pl.BlockSpec((G, tq, dv), lambda g, i, j: (g, i, 0)),
                pl.BlockSpec((G, tq, tk), lambda g, i, j: (g, i, j),
                             **scores_kwargs),
            ),
            scratch_shapes=[
                pltpu.VMEM((G, tq, 1), jnp.float32),    # running max  m
                pltpu.VMEM((G, tq, 1), jnp.float32),    # running sum  l
                pltpu.VMEM((G, tq, dv), jnp.float32),   # unnormalized context acc
            ],
            compiler_params=pltpu.CompilerParams(
                dimension_semantics=("parallel", "parallel", "arbitrary"),
                vmem_limit_bytes=vmem_limit,
            ),
        )

    try:
        ctx, scores = build(scores_buffered)(q, k, v)
    except Exception:
        if not scores_buffered:
            raise
        ctx, scores = build(False)(q, k, v)

    return ctx.reshape(B, H, Lq, dv), scores.reshape(B, H, Lq, Lk)


def _reference(Q, K, V, d_k):
    s = jnp.einsum("bhqd,bhkd->bhqk", Q, K) / math.sqrt(d_k)
    attn = jax.nn.softmax(s, axis=3)
    ctx = jnp.einsum("bhqk,bhkd->bhqd", attn, V)
    return ctx, s


if __name__ == "__main__":
    B, H, L, DK, DV = 2, 4, 8, 32, 32

    key = jax.random.PRNGKey(0)
    kq, kk, kv, km, kr = jax.random.split(key, 5)
    Q = jax.random.normal(kq, (B, H, L, DK), dtype=jnp.float32)
    K = jax.random.normal(kk, (B, H, L, DK), dtype=jnp.float32)
    V = jax.random.normal(kv, (B, H, L, DV), dtype=jnp.float32)
    # attn_mask / res_att: signature parity only (see module-level fidelity note).
    attn_mask = (jax.random.uniform(km, (B, H, L, L)) > 0.2).astype(jnp.float32)
    res_att = jax.random.normal(kr, (B, H, L, L), dtype=jnp.float32)

    ctx, scores = scaled_dot_product_attention(Q, K, V, attn_mask, res_att, d_k=DK)
    jax.block_until_ready((ctx, scores))

    ref_ctx, ref_scores = _reference(Q, K, V, DK)
    assert jnp.allclose(scores, ref_scores, atol=1e-4, rtol=1e-4)
    # Exact post-matmul normalization -> tight context tolerance.
    assert jnp.allclose(ctx, ref_ctx, atol=1e-4, rtol=1e-4)

    print("KERNEL_OK")
</pallas_src>

<mosaic_0001>
module attributes {stable_mosaic.version = 11 : i64} {
  func.func @_sdpa_kernel(%arg0: i32, %arg1: i32, %arg2: i32, %arg3: memref<4x8x32xf32, #tpu.memory_space<vmem>>, %arg4: memref<4x8x32xf32, #tpu.memory_space<vmem>>, %arg5: memref<4x8x32xf32, #tpu.memory_space<vmem>>, %arg6: memref<4x8x32xf32, #tpu.memory_space<vmem>>, %arg7: memref<4x8x8xf32, #tpu.memory_space<vmem>>, %arg8: memref<4x8x1xf32, #tpu.memory_space<vmem>>, %arg9: memref<4x8x1xf32, #tpu.memory_space<vmem>>, %arg10: memref<4x8x32xf32, #tpu.memory_space<vmem>>) attributes {dimension_semantics = [#tpu.dimension_semantics<parallel>, #tpu.dimension_semantics<parallel>, #tpu.dimension_semantics<arbitrary>], iteration_bounds = array<i64: 2, 1, 1>, scalar_prefetch = 0 : i64, scratch_operands = 3 : i64, tpu.core_type = #tpu.core_type<tc>, window_params = [{transform_indices = @transform_0, window_bounds = array<i64: 4, 8, 32>}, {transform_indices = @transform_1, window_bounds = array<i64: 4, 8, 32>}, {transform_indices = @transform_2, window_bounds = array<i64: 4, 8, 32>}, {transform_indices = @transform_3, window_bounds = array<i64: 4, 8, 32>}, {transform_indices = @transform_4, window_bounds = array<i64: 4, 8, 8>}]} {
    %c0_i32 = arith.constant 0 : i32
    %0 = arith.cmpi eq, %arg2, %c0_i32 : i32
    %1 = arith.extui %0 : i1 to i32
    %c0_i32_0 = arith.constant 0 : i32
    %2 = arith.cmpi ne, %1, %c0_i32_0 : i32
    scf.if %2 {
      %cst_36 = arith.constant 0xFF800000 : f32
      %35 = vector.broadcast %cst_36 : f32 to vector<4x8x1xf32>
      %c0_37 = arith.constant 0 : index
      %c0_38 = arith.constant 0 : index
      %c0_39 = arith.constant 0 : index
      %36 = vector.load %arg8[%c0_37, %c0_38, %c0_39] : memref<4x8x1xf32, #tpu.memory_space<vmem>>, vector<4x8x1xf32>
      tpu.vector_store %arg8[%c0_37, %c0_38, %c0_39], %35 {strides = array<i32>} : memref<4x8x1xf32, #tpu.memory_space<vmem>>, vector<4x8x1xf32>,
      %cst_40 = arith.constant 0.000000e+00 : f32
      %37 = vector.broadcast %cst_40 : f32 to vector<4x8x1xf32>
      %c0_41 = arith.constant 0 : index
      %c0_42 = arith.constant 0 : index
      %c0_43 = arith.constant 0 : index
      %38 = vector.load %arg9[%c0_41, %c0_42, %c0_43] : memref<4x8x1xf32, #tpu.memory_space<vmem>>, vector<4x8x1xf32>
      tpu.vector_store %arg9[%c0_41, %c0_42, %c0_43], %37 {strides = array<i32>} : memref<4x8x1xf32, #tpu.memory_space<vmem>>, vector<4x8x1xf32>,
      %cst_44 = arith.constant 0.000000e+00 : f32
      %39 = vector.broadcast %cst_44 : f32 to vector<4x8x32xf32>
      %c0_45 = arith.constant 0 : index
      %c0_46 = arith.constant 0 : index
      %c0_47 = arith.constant 0 : index
      %40 = vector.load %arg10[%c0_45, %c0_46, %c0_47] : memref<4x8x32xf32, #tpu.memory_space<vmem>>, vector<4x8x32xf32>
      tpu.vector_store %arg10[%c0_45, %c0_46, %c0_47], %39 {strides = array<i32>} : memref<4x8x32xf32, #tpu.memory_space<vmem>>, vector<4x8x32xf32>,
    } else {
    }
    %c0 = arith.constant 0 : index
    %c0_1 = arith.constant 0 : index
    %c0_2 = arith.constant 0 : index
    %3 = vector.load %arg3[%c0, %c0_1, %c0_2] : memref<4x8x32xf32, #tpu.memory_space<vmem>>, vector<4x8x32xf32>
    %cst = arith.constant 0.176776692 : f32
    %4 = vector.broadcast %cst : f32 to vector<4x8x32xf32>
    %5 = arith.mulf %3, %4 : vector<4x8x32xf32>
    %c0_3 = arith.constant 0 : index
    %c0_4 = arith.constant 0 : index
    %c0_5 = arith.constant 0 : index
    %6 = vector.load %arg4[%c0_3, %c0_4, %c0_5] : memref<4x8x32xf32, #tpu.memory_space<vmem>>, vector<4x8x32xf32>
    %c0_6 = arith.constant 0 : index
    %c0_7 = arith.constant 0 : index
    %c0_8 = arith.constant 0 : index
    %7 = vector.load %arg5[%c0_6, %c0_7, %c0_8] : memref<4x8x32xf32, #tpu.memory_space<vmem>>, vector<4x8x32xf32>
    "tpu.trace_start"() <{level = 10 : i32, message = "gqd,gkd->gqk"}> : () -> ()
    %cst_9 = arith.constant dense<0.000000e+00> : vector<4x8x8xf32>
    %8 = tpu.matmul %5, %6, %cst_9 {dimension_numbers = #tpu.dot_dimension_numbers<[2], [2], [1], [1], [0, 0, 0, 1, 1, 1], [0], [0]>} : vector<4x8x32xf32>, vector<4x8x32xf32>, vector<4x8x8xf32> -> vector<4x8x8xf32>
    "tpu.trace_stop"() : () -> ()
    %c0_10 = arith.constant 0 : index
    %c0_11 = arith.constant 0 : index
    %c0_12 = arith.constant 0 : index
    %9 = vector.load %arg7[%c0_10, %c0_11, %c0_12] : memref<4x8x8xf32, #tpu.memory_space<vmem>>, vector<4x8x8xf32>
    tpu.vector_store %arg7[%c0_10, %c0_11, %c0_12], %8 {strides = array<i32>} : memref<4x8x8xf32, #tpu.memory_space<vmem>>, vector<4x8x8xf32>,
    %c0_13 = arith.constant 0 : index
    %c0_14 = arith.constant 0 : index
    %c0_15 = arith.constant 0 : index
    %10 = vector.load %arg8[%c0_13, %c0_14, %c0_15] : memref<4x8x1xf32, #tpu.memory_space<vmem>>, vector<4x8x1xf32>
    %cst_16 = arith.constant dense<0xFF800000> : vector<4x8xf32>
    %11 = vector.multi_reduction <maximumf>, %8, %cst_16 [2] : vector<4x8x8xf32> to vector<4x8xf32>
    %12 = vector.shape_cast %11 : vector<4x8xf32> to vector<4x8x1xf32>
    %13 = arith.maximumf %10, %12 : vector<4x8x1xf32>
    %14 = arith.subf %10, %13 : vector<4x8x1xf32>
    %15 = math.exp %14 : vector<4x8x1xf32>
    %16 = vector.broadcast %13 : vector<4x8x1xf32> to vector<4x8x8xf32>
    %17 = arith.subf %8, %16 : vector<4x8x8xf32>
    %18 = math.exp %17 : vector<4x8x8xf32>
    %c0_17 = arith.constant 0 : index
    %c0_18 = arith.constant 0 : index
    %c0_19 = arith.constant 0 : index
    %19 = vector.load %arg9[%c0_17, %c0_18, %c0_19] : memref<4x8x1xf32, #tpu.memory_space<vmem>>, vector<4x8x1xf32>
    %20 = arith.mulf %15, %19 : vector<4x8x1xf32>
    %cst_20 = arith.constant dense<0.000000e+00> : vector<4x8xf32>
    %21 = vector.multi_reduction <add>, %18, %cst_20 [2] : vector<4x8x8xf32> to vector<4x8xf32>
    %22 = vector.shape_cast %21 : vector<4x8xf32> to vector<4x8x1xf32>
    %23 = arith.addf %20, %22 : vector<4x8x1xf32>
    %c0_21 = arith.constant 0 : index
    %c0_22 = arith.constant 0 : index
    %c0_23 = arith.constant 0 : index
    %24 = vector.load %arg9[%c0_21, %c0_22, %c0_23] : memref<4x8x1xf32, #tpu.memory_space<vmem>>, vector<4x8x1xf32>
    tpu.vector_store %arg9[%c0_21, %c0_22, %c0_23], %23 {strides = array<i32>} : memref<4x8x1xf32, #tpu.memory_space<vmem>>, vector<4x8x1xf32>,
    %c0_24 = arith.constant 0 : index
    %c0_25 = arith.constant 0 : index
    %c0_26 = arith.constant 0 : index
    %25 = vector.load %arg10[%c0_24, %c0_25, %c0_26] : memref<4x8x32xf32, #tpu.memory_space<vmem>>, vector<4x8x32xf32>
    %26 = vector.broadcast %15 : vector<4x8x1xf32> to vector<4x8x32xf32>
    %27 = arith.mulf %26, %25 : vector<4x8x32xf32>
    "tpu.trace_start"() <{level = 10 : i32, message = "gqk,gkd->gqd"}> : () -> ()
    %cst_27 = arith.constant dense<0.000000e+00> : vector<4x8x32xf32>
    %28 = tpu.matmul %18, %7, %cst_27 {dimension_numbers = #tpu.dot_dimension_numbers<[2], [1], [1], [2], [0, 0, 0, 1, 1, 2], [0], [0]>} : vector<4x8x8xf32>, vector<4x8x32xf32>, vector<4x8x32xf32> -> vector<4x8x32xf32>
    "tpu.trace_stop"() : () -> ()
    %29 = arith.addf %27, %28 : vector<4x8x32xf32>
    %c0_28 = arith.constant 0 : index
    %c0_29 = arith.constant 0 : index
    %c0_30 = arith.constant 0 : index
    %30 = vector.load %arg10[%c0_28, %c0_29, %c0_30] : memref<4x8x32xf32, #tpu.memory_space<vmem>>, vector<4x8x32xf32>
    tpu.vector_store %arg10[%c0_28, %c0_29, %c0_30], %29 {strides = array<i32>} : memref<4x8x32xf32, #tpu.memory_space<vmem>>, vector<4x8x32xf32>,
    %c0_31 = arith.constant 0 : index
    %c0_32 = arith.constant 0 : index
    %c0_33 = arith.constant 0 : index
    %31 = vector.load %arg8[%c0_31, %c0_32, %c0_33] : memref<4x8x1xf32, #tpu.memory_space<vmem>>, vector<4x8x1xf32>
    tpu.vector_store %arg8[%c0_31, %c0_32, %c0_33], %13 {strides = array<i32>} : memref<4x8x1xf32, #tpu.memory_space<vmem>>, vector<4x8x1xf32>,
    %c0_i32_34 = arith.constant 0 : i32
    %32 = arith.cmpi eq, %arg2, %c0_i32_34 : i32
    %33 = arith.extui %32 : i1 to i32
    %c0_i32_35 = arith.constant 0 : i32
    %34 = arith.cmpi ne, %33, %c0_i32_35 : i32
    scf.if %34 {
      %c0_36 = arith.constant 0 : index
      %c0_37 = arith.constant 0 : index
      %c0_38 = arith.constant 0 : index
      %35 = vector.load %arg10[%c0_36, %c0_37, %c0_38] : memref<4x8x32xf32, #tpu.memory_space<vmem>>, vector<4x8x32xf32>
      %c0_39 = arith.constant 0 : index
      %c0_40 = arith.constant 0 : index
      %c0_41 = arith.constant 0 : index
      %36 = vector.load %arg9[%c0_39, %c0_40, %c0_41] : memref<4x8x1xf32, #tpu.memory_space<vmem>>, vector<4x8x1xf32>
      %37 = vector.broadcast %36 : vector<4x8x1xf32> to vector<4x8x32xf32>
      %38 = arith.divf %35, %37 : vector<4x8x32xf32>
      %c0_42 = arith.constant 0 : index
      %c0_43 = arith.constant 0 : index
      %c0_44 = arith.constant 0 : index
      %39 = vector.load %arg6[%c0_42, %c0_43, %c0_44] : memref<4x8x32xf32, #tpu.memory_space<vmem>>, vector<4x8x32xf32>
      tpu.vector_store %arg6[%c0_42, %c0_43, %c0_44], %38 {strides = array<i32>} : memref<4x8x32xf32, #tpu.memory_space<vmem>>, vector<4x8x32xf32>,
    } else {
    }
    return
  }
  func.func @transform_0(%arg0: i32, %arg1: i32, %arg2: i32) -> (i32, i32, i32) {
    %c0_i32 = arith.constant 0 : i32
    %c0_i32_0 = arith.constant 0 : i32
    return %arg0, %arg1, %c0_i32 : i32, i32, i32
  }
  func.func @transform_1(%arg0: i32, %arg1: i32, %arg2: i32) -> (i32, i32, i32) {
    %c0_i32 = arith.constant 0 : i32
    %c0_i32_0 = arith.constant 0 : i32
    return %arg0, %arg2, %c0_i32 : i32, i32, i32
  }
  func.func @transform_2(%arg0: i32, %arg1: i32, %arg2: i32) -> (i32, i32, i32) {
    %c0_i32 = arith.constant 0 : i32
    %c0_i32_0 = arith.constant 0 : i32
    return %arg0, %arg2, %c0_i32 : i32, i32, i32
  }
  func.func @transform_3(%arg0: i32, %arg1: i32, %arg2: i32) -> (i32, i32, i32) {
    %c0_i32 = arith.constant 0 : i32
    %c0_i32_0 = arith.constant 0 : i32
    return %arg0, %arg1, %c0_i32 : i32, i32, i32
  }
  func.func @transform_4(%arg0: i32, %arg1: i32, %arg2: i32) -> (i32, i32, i32) {
    %c0_i32 = arith.constant 0 : i32
    return %arg0, %arg1, %arg2 : i32, i32, i32
  }
}

</mosaic_0001>

<llo_original>
// kernel: tpu_custom_call.1
$region0: #{tpu_custom_call.1}
  #allocation0 [shape = 'u32[]', space=smem, size = 0x4, offset = 0x4, fixed_abs, tag = 'smem constant byte address 0x4 - core index']
  #allocation1 [shape = 'u32[144,128]{1,0:T(1,128)}', space=vmem, size = 0x12000, scoped, tag = 'internal scratch']
  #allocation2 [shape = 'f32[4,8,1]{2,1,0:T(8,128)}', space=vmem, size = 0x4000, scoped, tag = 'scratch operand']
  #allocation3 [shape = 'f32[4,8,1]{2,1,0:T(8,128)}', space=vmem, size = 0x4000, scoped, tag = 'scratch operand']
  #allocation4 [shape = 'f32[4,8,32]{2,1,0:T(8,128)}', space=vmem, size = 0x4000, scoped, tag = 'scratch operand']
  %s0 = inlined_call_operand.hbm [shape: f32[8,8,32], index: 0, kind: input, shape index: {}]
  %s1 = inlined_call_operand.hbm [shape: f32[8,8,32], index: 1, kind: input, shape index: {}]
  %s2 = inlined_call_operand.hbm [shape: f32[8,8,32], index: 2, kind: input, shape index: {}]
  %s3 = inlined_call_operand.hbm [shape: f32[8,8,32], index: 3, kind: output, shape index: {0}]
  %s4 = inlined_call_operand.hbm [shape: f32[8,8,8], index: 4, kind: output, shape index: {1}]
  %5 = xla_tuple %s3, %s4
  %s6 = sld [smem:[#allocation0]]
  $region73: #{tpu_custom_call.1} parent=0
    _
  %s8 = ssub.s32 1, %s6
  %s9 = scalar_select 0, %s8, %s6
  $region1: #{tpu_custom_call.1} parent=0
    #allocation5 [shape = 'u8[32768]{0}', space=vmem, size = 0x8000, scoped, tag = 'input window, operand 0']
    #allocation6 [shape = 's32[2]{0}', space=sflag, size = 0x8, scoped, tag = 'scoped memory for tpu_custom_call.1']
    #allocation7 [shape = 's32[2]{0}', space=sflag, size = 0x8, scoped, tag = 'scoped memory for tpu_custom_call.1']
    #allocation8 [shape = 'u8[32768]{0}', space=vmem, size = 0x8000, scoped, tag = 'input window, operand 1']
    #allocation9 [shape = 's32[2]{0}', space=sflag, size = 0x8, scoped, tag = 'scoped memory for tpu_custom_call.1']
    #allocation10 [shape = 'u8[32768]{0}', space=vmem, size = 0x8000, scoped, tag = 'input window, operand 2']
    #allocation11 [shape = 'u8[32768]{0}', space=vmem, size = 0x8000, scoped, tag = 'output window, operand 0']
    #allocation12 [shape = 'u8[32768]{0}', space=vmem, size = 0x8000, scoped, tag = 'output window, operand 1']
    #allocation13 [shape = 's32[2]{0}', space=sflag, size = 0x8, scoped, tag = 'scoped memory for tpu_custom_call.1']
    %10 = vsyncpa [#allocation6], 0
    %s11 = scalar_lea.sflag [#allocation6], 1
    %12 = vsyncpa %s11, 0
    %13 = vsyncpa [#allocation9], 0
    %s14 = scalar_lea.sflag [#allocation9], 1
    %15 = vsyncpa %s14, 0
    %16 = vsyncpa [#allocation7], 0
    %s17 = scalar_lea.sflag [#allocation7], 1
    %18 = vsyncpa %s17, 0
    %19 = vsyncpa [#allocation13], 0
    %s20 = scalar_lea.sflag [#allocation13], 1
    %21 = vsyncpa %s20, 0
    loop: start=0, step=1, limit=4
    $region2: #{tpu_custom_call.1} parent=1 // loop_pre_header
      _
    $region3: #{tpu_custom_call.1} parent=1 // loop_header
      %s23 = sphi 0, %s27
      %p24 = scmp.ge.s32.totalorder %s23, 4
      %s30 = sphi 0, %s49
      %s31 = sphi 0, %s45
      %s32 = sphi 0, %s41
      %s33 = sphi 0, %s30
      %s34 = sphi 0, %s31
      %s35 = sphi 0, %s32
      %s36 = sphi 0, %s33
      %s37 = sphi 0, %s34
      %s38 = sphi 0, %s35
      %s54 = sphi 0, %s56
      %s57 = sphi 0, %s54
      %s58 = sphi 0, %s57
      %s74 = sphi 0, %s58
      %s82 = sphi 0, %s84
      %s85 = sphi 0, %s82
      %s86 = sphi 0, %s85
      %s102 = sphi 0, %s86
      %s110 = sphi 0, %s112
      %s113 = sphi 0, %s110
      %s114 = sphi 0, %s113
      %s130 = sphi 0, %s114
      %s138 = sphi 0, %s140
      %s141 = sphi 0, %s138
      %s142 = sphi 0, %s141
      %s158 = sphi 0, %s142
      %s168 = sphi 0, %s170
      %s171 = sphi 0, %s168
      %s172 = sphi 0, %s171
      %s188 = sphi 0, %s172
    $region4: #{tpu_custom_call.1} parent=1 // loop_header_branch
      %26 = sbr.rel (%p24) target = $region8
    $region5: #{tpu_custom_call.1} parent=1 // loop_body
      %s28 = ssub.s32 %s23, 1
      %s29 = ssub.s32 %s23, 2
      %s39 = sadd.s32 1, %s32
      %p40 = scmp.ge.s32.totalorder %s39, 1
      %s41 = scalar_select %p40, 0, %s39
      %s42 = sadd.s32 1, %s31
      %s43 = scalar_select %p40, %s42, %s31
      %p44 = scmp.ge.s32.totalorder %s43, 1
      %s45 = scalar_select %p44, 0, %s43
      %s46 = sadd.s32 1, %s30
      %s47 = scalar_select %p44, %s46, %s30
      %p48 = scmp.ge.s32.totalorder %s47, 2
      %s49 = scalar_select %p48, 0, %s47
      %s50 = ssub.s32 %s30, %s49
      %s51 = ssub.s32 %s31, %s45
      %s52 = sor.u32 %s50, %s51
      %p53 = scmp.eq.s32.totalorder %s52, 0
      %s55 = sadd.s32 %s54, 1
      %s56 = scalar_select %p53, %s54, %s55
      %p59 = pneg %p53
      %p60 = scmp.eq.s32.totalorder %s23, 1
      %p61 = por %p59, %p60
      %p62 = scmp.ne.s32.totalorder %s54, %s57
      %p63 = scmp.eq.s32.totalorder %s23, 0
      %p64 = por %p62, %p63
      %p65 = scmp.ne.s32.totalorder %s54, %s57
      %p66 = scmp.eq.s32.totalorder %s28, 1
      %p67 = por %p65, %p66
      %p68 = scmp.ne.s32.totalorder %s57, %s58
      %p69 = scmp.eq.s32.totalorder %s28, 0
      %p70 = por %p68, %p69
      %p71 = scmp.ne.s32.totalorder %s57, %s58
      %p72 = scmp.eq.s32.totalorder %s29, 1
      %p73 = por %p71, %p72
      %p75 = scmp.ne.s32.totalorder %s58, %s74
      %p76 = scmp.eq.s32.totalorder %s29, 0
      %p77 = por %p75, %p76
      %s78 = ssub.s32 %s30, %s49
      %s79 = ssub.s32 %s32, %s41
      %s80 = sor.u32 %s78, %s79
      %p81 = scmp.eq.s32.totalorder %s80, 0
      %s83 = sadd.s32 %s82, 1
      %s84 = scalar_select %p81, %s82, %s83
      %p87 = pneg %p81
      %p88 = scmp.eq.s32.totalorder %s23, 1
      %p89 = por %p87, %p88
      %p90 = scmp.ne.s32.totalorder %s82, %s85
      %p91 = scmp.eq.s32.totalorder %s23, 0
      %p92 = por %p90, %p91
      %p93 = scmp.ne.s32.totalorder %s82, %s85
      %p94 = scmp.eq.s32.totalorder %s28, 1
      %p95 = por %p93, %p94
      %p96 = scmp.ne.s32.totalorder %s85, %s86
      %p97 = scmp.eq.s32.totalorder %s28, 0
      %p98 = por %p96, %p97
      %p99 = scmp.ne.s32.totalorder %s85, %s86
      %p100 = scmp.eq.s32.totalorder %s29, 1
      %p101 = por %p99, %p100
      %p103 = scmp.ne.s32.totalorder %s86, %s102
      %p104 = scmp.eq.s32.totalorder %s29, 0
      %p105 = por %p103, %p104
      %s106 = ssub.s32 %s30, %s49
      %s107 = ssub.s32 %s32, %s41
      %s108 = sor.u32 %s106, %s107
      %p109 = scmp.eq.s32.totalorder %s108, 0
      %s111 = sadd.s32 %s110, 1
      %s112 = scalar_select %p109, %s110, %s111
      %p115 = pneg %p109
      %p116 = scmp.eq.s32.totalorder %s23, 1
      %p117 = por %p115, %p116
      %p118 = scmp.ne.s32.totalorder %s110, %s113
      %p119 = scmp.eq.s32.totalorder %s23, 0
      %p120 = por %p118, %p119
      %p121 = scmp.ne.s32.totalorder %s110, %s113
      %p122 = scmp.eq.s32.totalorder %s28, 1
      %p123 = por %p121, %p122
      %p124 = scmp.ne.s32.totalorder %s113, %s114
      %p125 = scmp.eq.s32.totalorder %s28, 0
      %p126 = por %p124, %p125
      %p127 = scmp.ne.s32.totalorder %s113, %s114
      %p128 = scmp.eq.s32.totalorder %s29, 1
      %p129 = por %p127, %p128
      %p131 = scmp.ne.s32.totalorder %s114, %s130
      %p132 = scmp.eq.s32.totalorder %s29, 0
      %p133 = por %p131, %p132
      %s134 = ssub.s32 %s30, %s49
      %s135 = ssub.s32 %s31, %s45
      %s136 = sor.u32 %s134, %s135
      %p137 = scmp.eq.s32.totalorder %s136, 0
      %s139 = sadd.s32 %s138, 1
      %s140 = scalar_select %p137, %s138, %s139
      %p143 = pneg %p137
      %p144 = scmp.eq.s32.totalorder %s23, 1
      %p145 = por %p143, %p144
      %p146 = scmp.ne.s32.totalorder %s138, %s141
      %p147 = scmp.eq.s32.totalorder %s23, 0
      %p148 = por %p146, %p147
      %p149 = scmp.ne.s32.totalorder %s138, %s141
      %p150 = scmp.eq.s32.totalorder %s28, 1
      %p151 = por %p149, %p150
      %p152 = scmp.ne.s32.totalorder %s141, %s142
      %p153 = scmp.eq.s32.totalorder %s28, 0
      %p154 = por %p152, %p153
      %p155 = scmp.ne.s32.totalorder %s141, %s142
      %p156 = scmp.eq.s32.totalorder %s29, 1
      %p157 = por %p155, %p156
      %p159 = scmp.ne.s32.totalorder %s142, %s158
      %p160 = scmp.eq.s32.totalorder %s29, 0
      %p161 = por %p159, %p160
      %s162 = ssub.s32 %s30, %s49
      %s163 = ssub.s32 %s31, %s45
      %s164 = sor.u32 %s162, %s163
      %s165 = ssub.s32 %s32, %s41
      %s166 = sor.u32 %s164, %s165
      %p167 = scmp.eq.s32.totalorder %s166, 0
      %s169 = sadd.s32 %s168, 1
      %s170 = scalar_select %p167, %s168, %s169
      %p173 = pneg %p167
      %p174 = scmp.eq.s32.totalorder %s23, 1
      %p175 = por %p173, %p174
      %p176 = scmp.ne.s32.totalorder %s168, %s171
      %p177 = scmp.eq.s32.totalorder %s23, 0
      %p178 = por %p176, %p177
      %p179 = scmp.ne.s32.totalorder %s168, %s171
      %p180 = scmp.eq.s32.totalorder %s28, 1
      %p181 = por %p179, %p180
      %p182 = scmp.ne.s32.totalorder %s171, %s172
      %p183 = scmp.eq.s32.totalorder %s28, 0
      %p184 = por %p182, %p183
      %p185 = scmp.ne.s32.totalorder %s171, %s172
      %p186 = scmp.eq.s32.totalorder %s29, 1
      %p187 = por %p185, %p186
      %p189 = scmp.ne.s32.totalorder %s172, %s188
      %p190 = scmp.eq.s32.totalorder %s29, 0
      %p191 = por %p189, %p190
      %p192 = scmp.le.s32.totalorder 1, %s23
      %p193 = scmp.lt.s32.totalorder %s23, 3
      %p194 = pnand %p192, %p193
      %p195 = pneg %p194
      // Predicated region
      $region9: #{tpu_custom_call.1} parent=5 // pred_check
        _
      $region10: #{tpu_custom_call.1} parent=5 // pred_check_branch
        %197 = sbr.rel (%p194) target = $region12
      $region11: #{tpu_custom_call.1} parent=5 // pred_region
        %s198 = ssub.s32 %s23, 1
      $region12: #{tpu_custom_call.1} parent=5 // pred_fallthru
        _
      %p199 = scmp.lt.s32.totalorder %s23, 2
      // Predicated region
      $region13: #{tpu_custom_call.1} parent=5 // pred_check
        %p200 = pneg %p199
      $region14: #{tpu_custom_call.1} parent=5 // pred_check_branch
        %202 = sbr.rel (%p200) target = $region16
      $region15: #{tpu_custom_call.1} parent=5 // pred_region
        // Predicated region
        $region17: #{tpu_custom_call.1} parent=15 // pred_check
          %p203 = pneg %p64
        $region18: #{tpu_custom_call.1} parent=15 // pred_check_branch
          %205 = sbr.rel (%p203) target = $region20
        $region19: #{tpu_custom_call.1} parent=15 // pred_region
          %s206 = sand.u32 %s54, 1
          %s207 = scalar_lea.sflag [#allocation6], %s206
          %s208 = sand.u32 %s54, 1
          %s209 = smul.addr %s208, 32
          %s210 = scalar_lea.vmem [#allocation5], %s209
          %s211 = smul.u32 4, %s30
          %s213 = ssub.s32 512, 512
          %214 = vsyncadd %s207, %s213
          %s215 = sadd.s32 %s31, %s211
          %s216 = smul.addr %s215, 128
          %s217 = scalar_lea.hbm %s0, %s216
          %s218 = sshll.u32 %s210, 4
          %s219 = int_to_ptr.vmem [resolvable:$true] %s218
          %224 = dma.hbm_to_vmem [thread:$0]  %s217, 512, %s219, %s207, 128, 128, 8
        $region20: #{tpu_custom_call.1} parent=15 // pred_fallthru
          _
        // Predicated region
        $region21: #{tpu_custom_call.1} parent=15 // pred_check
          %p225 = pneg %p92
        $region22: #{tpu_custom_call.1} parent=15 // pred_check_branch
          %227 = sbr.rel (%p225) target = $region24
        $region23: #{tpu_custom_call.1} parent=15 // pred_region
          %s228 = sand.u32 %s23, 1
          %s229 = scalar_lea.sflag [#allocation9], %s228
          %s230 = sand.u32 %s82, 1
          %s231 = smul.addr %s230, 32
          %s232 = scalar_lea.vmem [#allocation8], %s231
          %s233 = smul.u32 4, %s30
          %s235 = ssub.s32 512, 512
          %236 = vsyncadd %s229, %s235
          %s237 = sadd.s32 %s32, %s233
          %s238 = smul.addr %s237, 128
          %s239 = scalar_lea.hbm %s1, %s238
          %s240 = sshll.u32 %s232, 4
          %s241 = int_to_ptr.vmem [resolvable:$true] %s240
          %246 = dma.hbm_to_vmem [thread:$0]  %s239, 512, %s241, %s229, 128, 128, 8
        $region24: #{tpu_custom_call.1} parent=15 // pred_fallthru
          _
        // Predicated region
        $region25: #{tpu_custom_call.1} parent=15 // pred_check
          %p247 = pneg %p120
        $region26: #{tpu_custom_call.1} parent=15 // pred_check_branch
          %249 = sbr.rel (%p247) target = $region28
        $region27: #{tpu_custom_call.1} parent=15 // pred_region
          %s250 = sand.u32 %s23, 1
          %s251 = scalar_lea.sflag [#allocation9], %s250
          %s252 = sand.u32 %s110, 1
          %s253 = smul.addr %s252, 32
          %s254 = scalar_lea.vmem [#allocation10], %s253
          %s255 = smul.u32 4, %s30
          %s257 = ssub.s32 512, 512
          %258 = vsyncadd %s251, %s257
          %s259 = sadd.s32 %s32, %s255
          %s260 = smul.addr %s259, 128
          %s261 = scalar_lea.hbm %s2, %s260
          %s262 = sshll.u32 %s254, 4
          %s263 = int_to_ptr.vmem [resolvable:$true] %s262
          %268 = dma.hbm_to_vmem [thread:$0]  %s261, 512, %s263, %s251, 128, 128, 8
        $region28: #{tpu_custom_call.1} parent=15 // pred_fallthru
          _
      $region16: #{tpu_custom_call.1} parent=5 // pred_fallthru
        _
      %p269 = scmp.le.s32.totalorder 1, %s23
      %p270 = scmp.lt.s32.totalorder %s23, 3
      %p271 = pnand %p269, %p270
      %p272 = pneg %p271
      // Predicated region
      $region29: #{tpu_custom_call.1} parent=5 // pred_check
        _
      $region30: #{tpu_custom_call.1} parent=5 // pred_check_branch
        %274 = sbr.rel (%p271) target = $region32
      $region31: #{tpu_custom_call.1} parent=5 // pred_region
        %s275 = ssub.s32 %s23, 1
        %s276 = sand.u32 %s57, 1
        %s277 = scalar_lea.sflag [#allocation6], %s276
        %s278 = sand.u32 %s57, 1
        %s279 = smul.addr %s278, 32
        %s280 = scalar_lea.vmem [#allocation5], %s279
        // Predicated region
        $region33: #{tpu_custom_call.1} parent=31 // pred_check
          %p281 = pneg %p70
        $region34: #{tpu_custom_call.1} parent=31 // pred_check_branch
          %283 = sbr.rel (%p281) target = $region36
        $region35: #{tpu_custom_call.1} parent=31 // pred_region
          %284 = dma.done %s277, 512
        $region36: #{tpu_custom_call.1} parent=31 // pred_fallthru
          _
        %s285 = sand.u32 %s28, 1
        %s286 = scalar_lea.sflag [#allocation9], %s285
        %s287 = sand.u32 %s85, 1
        %s288 = smul.addr %s287, 32
        %s289 = scalar_lea.vmem [#allocation8], %s288
        // Predicated region
        $region37: #{tpu_custom_call.1} parent=31 // pred_check
          %p290 = pneg %p98
        $region38: #{tpu_custom_call.1} parent=31 // pred_check_branch
          %292 = sbr.rel (%p290) target = $region40
        $region39: #{tpu_custom_call.1} parent=31 // pred_region
          %293 = dma.done %s286, 512
        $region40: #{tpu_custom_call.1} parent=31 // pred_fallthru
          _
        %s294 = sand.u32 %s28, 1
        %s295 = scalar_lea.sflag [#allocation9], %s294
        %s296 = sand.u32 %s113, 1
        %s297 = smul.addr %s296, 32
        %s298 = scalar_lea.vmem [#allocation10], %s297
        // Predicated region
        $region41: #{tpu_custom_call.1} parent=31 // pred_check
          %p299 = pneg %p126
        $region42: #{tpu_custom_call.1} parent=31 // pred_check_branch
          %301 = sbr.rel (%p299) target = $region44
        $region43: #{tpu_custom_call.1} parent=31 // pred_region
          %302 = dma.done %s295, 512
        $region44: #{tpu_custom_call.1} parent=31 // pred_fallthru
          _
        %s303 = sand.u32 %s57, 1
        %s304 = scalar_lea.sflag [#allocation6], %s303
        %s305 = sand.u32 %s57, 1
        %s306 = smul.addr %s305, 32
        %s307 = scalar_lea.vmem [#allocation5], %s306
        %p308 = pneg %p70
        %p309 = pneg %p67
        %s310 = sand.u32 %s28, 1
        %s311 = scalar_lea.sflag [#allocation9], %s310
        %s312 = sand.u32 %s85, 1
        %s313 = smul.addr %s312, 32
        %s314 = scalar_lea.vmem [#allocation8], %s313
        %p315 = pneg %p98
        %p316 = pneg %p95
        %s317 = sand.u32 %s28, 1
        %s318 = scalar_lea.sflag [#allocation9], %s317
        %s319 = sand.u32 %s113, 1
        %s320 = smul.addr %s319, 32
        %s321 = scalar_lea.vmem [#allocation10], %s320
        %p322 = pneg %p126
        %p323 = pneg %p123
        %p324 = pneg %p154
        %p325 = pneg %p151
        %s326 = sand.u32 %s141, 1
        %s327 = scalar_lea.sflag [#allocation7], %s326
        %s328 = sand.u32 %s141, 1
        %s329 = smul.addr %s328, 32
        %s330 = scalar_lea.vmem [#allocation11], %s329
        %p331 = pneg %p184
        %p332 = pneg %p181
        %s333 = sand.u32 %s171, 1
        %s334 = scalar_lea.sflag [#allocation13], %s333
        %s335 = sand.u32 %s171, 1
        %s336 = smul.addr %s335, 32
        %s337 = scalar_lea.vmem [#allocation12], %s336
        %s338 = smul.u32 4, %s33
        %s339 = smul.u32 4, %s33
        %s340 = smul.u32 4, %s33
        %s341 = smul.u32 4, %s33
        %s342 = smul.u32 4, %s33
        %p343 = scmp.eq.s32.totalorder %s35, 0
        // Predicated region
        $region45: #{tpu_custom_call.1} parent=31 // pred_check
          %p344 = pneg %p343
        $region46: #{tpu_custom_call.1} parent=31 // pred_check_branch
          %346 = sbr.rel (%p344) target = $region48
        $region47: #{tpu_custom_call.1} parent=31 // pred_region
          %vm347 = vcmask 7168
          %348 = vst.msk [vmem:[#allocation2] sm:$0xff] %vm347, -inf
          %349 = vst.msk [vmem:[#allocation2 + $0x8] sm:$0xff] %vm347, -inf
          %350 = vst.msk [vmem:[#allocation2 + $0x10] sm:$0xff] %vm347, -inf
          %351 = vst.msk [vmem:[#allocation2 + $0x18] sm:$0xff] %vm347, -inf
          %352 = vst.msk [vmem:[#allocation3] sm:$0xff] %vm347, 0.0
          %353 = vst.msk [vmem:[#allocation3 + $0x8] sm:$0xff] %vm347, 0.0
          %354 = vst.msk [vmem:[#allocation3 + $0x10] sm:$0xff] %vm347, 0.0
          %355 = vst.msk [vmem:[#allocation3 + $0x18] sm:$0xff] %vm347, 0.0
          %vm356 = vcmask 261120
          %357 = vst.msk [vmem:[#allocation4] sm:$0xff] %vm356, 0.0
          %358 = vst.msk [vmem:[#allocation4 + $0x8] sm:$0xff] %vm356, 0.0
          %359 = vst.msk [vmem:[#allocation4 + $0x10] sm:$0xff] %vm356, 0.0
          %360 = vst.msk [vmem:[#allocation4 + $0x18] sm:$0xff] %vm356, 0.0
        $region48: #{tpu_custom_call.1} parent=31 // pred_fallthru
          _
        %v361 = vld [vmem:[%s280] sm:$0xff]
        %v362 = vld [vmem:[%s280 + $0x8] sm:$0xff]
        %v363 = vld [vmem:[%s280 + $0x10] sm:$0xff]
        %v364 = vld [vmem:[%s280 + $0x18] sm:$0xff]
        %v365 = vmul.f32 %v361, 0.17677669
        %v366 = vmul.f32 %v362, 0.17677669
        %v367 = vmul.f32 %v363, 0.17677669
        %v368 = vmul.f32 %v364, 0.17677669
        %v369 = vld [vmem:[%s289] sm:$0xff]
        %v370 = vld [vmem:[%s289 + $0x8] sm:$0xff]
        %v371 = vld [vmem:[%s289 + $0x10] sm:$0xff]
        %v372 = vld [vmem:[%s289 + $0x18] sm:$0xff]
        %v373 = vld [vmem:[%s298] sm:$0xff]
        %v374 = vld [vmem:[%s298 + $0x8] sm:$0xff]
        %v375 = vld [vmem:[%s298 + $0x10] sm:$0xff]
        %v376 = vld [vmem:[%s298 + $0x18] sm:$0xff]
        %vm377 = vcmask 261120
        %v379 = vsel %vm377, %v365, 0
        %v382 = vsel %vm377, %v369, 0
        %384 = vmatprep.subr.mxu0 0.0
        %385 = vmatpush1.xpose.msra.mxu0 %v382
        %386 = vmatprep.subr.mxu0 0.0
        %387 = vmatpush1.xpose.msra.mxu0 0.0
        %388 = vmatprep.subr.mxu0 0.0
        %389 = vmatpush1.xpose.msra.mxu0 0.0
        %390 = vmatprep.subr.mxu0 0.0
        %391 = vmatpush1.xpose.msra.mxu0 0.0
        %392 = vmatprep.subr.mxu0 0.0
        %393 = vmatpush1.xpose.msra.mxu0 0.0
        %394 = vmatprep.subr.mxu0 0.0
        %395 = vmatpush1.xpose.msra.mxu0 0.0
        %396 = vmatprep.subr.mxu0 0.0
        %397 = vmatpush1.xpose.msra.mxu0 0.0
        %398 = vmatprep.subr.mxu0 0.0
        %399 = vmatpush1.xpose.msra.mxu0 0.0
        %400 = vmatprep.subr.mxu0 0.0
        %401 = vmatpush1.xpose.msra.mxu0 0.0
        %402 = vmatprep.subr.mxu0 0.0
        %403 = vmatpush1.xpose.msra.mxu0 0.0
        %404 = vmatprep.subr.mxu0 0.0
        %405 = vmatpush1.xpose.msra.mxu0 0.0
        %406 = vmatprep.subr.mxu0 0.0
        %407 = vmatpush1.xpose.msra.mxu0 0.0
        %408 = vmatprep.subr.mxu0 0.0
        %409 = vmatpush1.xpose.msra.mxu0 0.0
        %410 = vmatprep.subr.mxu0 0.0
        %411 = vmatpush1.xpose.msra.mxu0 0.0
        %412 = vmatprep.subr.mxu0 0.0
        %413 = vmatpush1.xpose.msra.mxu0 0.0
        %414 = vmatprep.subr.mxu0 0.0
        %415 = vmatpush1.xpose.msra.mxu0 0.0
        %416 = vmatprep.subr.mxu0 0.0
        %417 = vmatpush1.xpose.msra.mxu0 0.0
        %418 = vmatprep.subr.mxu0 0.0
        %419 = vmatpush1.xpose.msra.mxu0 0.0
        %420 = vmatprep.subr.mxu0 0.0
        %421 = vmatpush1.xpose.msra.mxu0 0.0
        %422 = vmatprep.subr.mxu0 0.0
        %423 = vmatpush1.xpose.msra.mxu0 0.0
        %424 = vmatprep.subr.mxu0 0.0
        %425 = vmatpush1.xpose.msra.mxu0 0.0
        %426 = vmatprep.subr.mxu0 0.0
        %427 = vmatpush1.xpose.msra.mxu0 0.0
        %428 = vmatprep.subr.mxu0 0.0
        %429 = vmatpush1.xpose.msra.mxu0 0.0
        %430 = vmatprep.subr.mxu0 0.0
        %431 = vmatpush1.xpose.msra.mxu0 0.0
        %432 = vmatprep.subr.mxu0 0.0
        %433 = vmatpush1.xpose.msra.mxu0 0.0
        %434 = vmatprep.subr.mxu0 0.0
        %435 = vmatpush1.xpose.msra.mxu0 0.0
        %436 = vmatprep.subr.mxu0 0.0
        %437 = vmatpush1.xpose.msra.mxu0 0.0
        %438 = vmatprep.subr.mxu0 0.0
        %439 = vmatpush1.xpose.msra.mxu0 0.0
        %440 = vmatprep.subr.mxu0 0.0
        %441 = vmatpush1.xpose.msra.mxu0 0.0
        %442 = vmatprep.subr.mxu0 0.0
        %443 = vmatpush1.xpose.msra.mxu0 0.0
        %444 = vmatprep.subr.mxu0 0.0
        %445 = vmatpush1.xpose.msra.mxu0 0.0
        %446 = vmatprep.subr.mxu0 0.0
        %447 = vmatpush1.xpose.msra.mxu0 0.0
        %448 = vmatprep.mubr.f32.mxu0 0.0
        %449 = vmatmul.mubr.f32.gmra.mrb[0].mxu0 %v379
        %v450 = vpop.f32.mrb[0].mxu0
        %v451 = vadd.f32 0.0, %v450
        %v452 = vpop.f32.mrb[0].mxu0
        %453 = vdwg.mxu0
        %v455 = vsel %vm377, %v366, 0
        %v458 = vsel %vm377, %v370, 0
        %460 = vmatprep.subr.mxu0 0.0
        %461 = vmatpush1.xpose.msra.mxu0 %v458
        %462 = vmatprep.subr.mxu0 0.0
        %463 = vmatpush1.xpose.msra.mxu0 0.0
        %464 = vmatprep.subr.mxu0 0.0
        %465 = vmatpush1.xpose.msra.mxu0 0.0
        %466 = vmatprep.subr.mxu0 0.0
        %467 = vmatpush1.xpose.msra.mxu0 0.0
        %468 = vmatprep.subr.mxu0 0.0
        %469 = vmatpush1.xpose.msra.mxu0 0.0
        %470 = vmatprep.subr.mxu0 0.0
        %471 = vmatpush1.xpose.msra.mxu0 0.0
        %472 = vmatprep.subr.mxu0 0.0
        %473 = vmatpush1.xpose.msra.mxu0 0.0
        %474 = vmatprep.subr.mxu0 0.0
        %475 = vmatpush1.xpose.msra.mxu0 0.0
        %476 = vmatprep.subr.mxu0 0.0
        %477 = vmatpush1.xpose.msra.mxu0 0.0
        %478 = vmatprep.subr.mxu0 0.0
        %479 = vmatpush1.xpose.msra.mxu0 0.0
        %480 = vmatprep.subr.mxu0 0.0
        %481 = vmatpush1.xpose.msra.mxu0 0.0
        %482 = vmatprep.subr.mxu0 0.0
        %483 = vmatpush1.xpose.msra.mxu0 0.0
        %484 = vmatprep.subr.mxu0 0.0
        %485 = vmatpush1.xpose.msra.mxu0 0.0
        %486 = vmatprep.subr.mxu0 0.0
        %487 = vmatpush1.xpose.msra.mxu0 0.0
        %488 = vmatprep.subr.mxu0 0.0
        %489 = vmatpush1.xpose.msra.mxu0 0.0
        %490 = vmatprep.subr.mxu0 0.0
        %491 = vmatpush1.xpose.msra.mxu0 0.0
        %492 = vmatprep.subr.mxu0 0.0
        %493 = vmatpush1.xpose.msra.mxu0 0.0
        %494 = vmatprep.subr.mxu0 0.0
        %495 = vmatpush1.xpose.msra.mxu0 0.0
        %496 = vmatprep.subr.mxu0 0.0
        %497 = vmatpush1.xpose.msra.mxu0 0.0
        %498 = vmatprep.subr.mxu0 0.0
        %499 = vmatpush1.xpose.msra.mxu0 0.0
        %500 = vmatprep.subr.mxu0 0.0
        %501 = vmatpush1.xpose.msra.mxu0 0.0
        %502 = vmatprep.subr.mxu0 0.0
        %503 = vmatpush1.xpose.msra.mxu0 0.0
        %504 = vmatprep.subr.mxu0 0.0
        %505 = vmatpush1.xpose.msra.mxu0 0.0
        %506 = vmatprep.subr.mxu0 0.0
        %507 = vmatpush1.xpose.msra.mxu0 0.0
        %508 = vmatprep.subr.mxu0 0.0
        %509 = vmatpush1.xpose.msra.mxu0 0.0
        %510 = vmatprep.subr.mxu0 0.0
        %511 = vmatpush1.xpose.msra.mxu0 0.0
        %512 = vmatprep.subr.mxu0 0.0
        %513 = vmatpush1.xpose.msra.mxu0 0.0
        %514 = vmatprep.subr.mxu0 0.0
        %515 = vmatpush1.xpose.msra.mxu0 0.0
        %516 = vmatprep.subr.mxu0 0.0
        %517 = vmatpush1.xpose.msra.mxu0 0.0
        %518 = vmatprep.subr.mxu0 0.0
        %519 = vmatpush1.xpose.msra.mxu0 0.0
        %520 = vmatprep.subr.mxu0 0.0
        %521 = vmatpush1.xpose.msra.mxu0 0.0
        %522 = vmatprep.subr.mxu0 0.0
        %523 = vmatpush1.xpose.msra.mxu0 0.0
        %524 = vmatprep.mubr.f32.mxu0 0.0
        %525 = vmatmul.mubr.f32.gmra.mrb[0].mxu0 %v455
        %v526 = vpop.f32.mrb[0].mxu0
        %v527 = vadd.f32 0.0, %v526
        %v528 = vpop.f32.mrb[0].mxu0
        %529 = vdwg.mxu0
        %v531 = vsel %vm377, %v367, 0
        %v534 = vsel %vm377, %v371, 0
        %536 = vmatprep.subr.mxu0 0.0
        %537 = vmatpush1.xpose.msra.mxu0 %v534
        %538 = vmatprep.subr.mxu0 0.0
        %539 = vmatpush1.xpose.msra.mxu0 0.0
        %540 = vmatprep.subr.mxu0 0.0
        %541 = vmatpush1.xpose.msra.mxu0 0.0
        %542 = vmatprep.subr.mxu0 0.0
        %543 = vmatpush1.xpose.msra.mxu0 0.0
        %544 = vmatprep.subr.mxu0 0.0
        %545 = vmatpush1.xpose.msra.mxu0 0.0
        %546 = vmatprep.subr.mxu0 0.0
        %547 = vmatpush1.xpose.msra.mxu0 0.0
        %548 = vmatprep.subr.mxu0 0.0
        %549 = vmatpush1.xpose.msra.mxu0 0.0
        %550 = vmatprep.subr.mxu0 0.0
        %551 = vmatpush1.xpose.msra.mxu0 0.0
        %552 = vmatprep.subr.mxu0 0.0
        %553 = vmatpush1.xpose.msra.mxu0 0.0
        %554 = vmatprep.subr.mxu0 0.0
        %555 = vmatpush1.xpose.msra.mxu0 0.0
        %556 = vmatprep.subr.mxu0 0.0
        %557 = vmatpush1.xpose.msra.mxu0 0.0
        %558 = vmatprep.subr.mxu0 0.0
        %559 = vmatpush1.xpose.msra.mxu0 0.0
        %560 = vmatprep.subr.mxu0 0.0
        %561 = vmatpush1.xpose.msra.mxu0 0.0
        %562 = vmatprep.subr.mxu0 0.0
        %563 = vmatpush1.xpose.msra.mxu0 0.0
        %564 = vmatprep.subr.mxu0 0.0
        %565 = vmatpush1.xpose.msra.mxu0 0.0
        %566 = vmatprep.subr.mxu0 0.0
        %567 = vmatpush1.xpose.msra.mxu0 0.0
        %568 = vmatprep.subr.mxu0 0.0
        %569 = vmatpush1.xpose.msra.mxu0 0.0
        %570 = vmatprep.subr.mxu0 0.0
        %571 = vmatpush1.xpose.msra.mxu0 0.0
        %572 = vmatprep.subr.mxu0 0.0
        %573 = vmatpush1.xpose.msra.mxu0 0.0
        %574 = vmatprep.subr.mxu0 0.0
        %575 = vmatpush1.xpose.msra.mxu0 0.0
        %576 = vmatprep.subr.mxu0 0.0
        %577 = vmatpush1.xpose.msra.mxu0 0.0
        %578 = vmatprep.subr.mxu0 0.0
        %579 = vmatpush1.xpose.msra.mxu0 0.0
        %580 = vmatprep.subr.mxu0 0.0
        %581 = vmatpush1.xpose.msra.mxu0 0.0
        %582 = vmatprep.subr.mxu0 0.0
        %583 = vmatpush1.xpose.msra.mxu0 0.0
        %584 = vmatprep.subr.mxu0 0.0
        %585 = vmatpush1.xpose.msra.mxu0 0.0
        %586 = vmatprep.subr.mxu0 0.0
        %587 = vmatpush1.xpose.msra.mxu0 0.0
        %588 = vmatprep.subr.mxu0 0.0
        %589 = vmatpush1.xpose.msra.mxu0 0.0
        %590 = vmatprep.subr.mxu0 0.0
        %591 = vmatpush1.xpose.msra.mxu0 0.0
        %592 = vmatprep.subr.mxu0 0.0
        %593 = vmatpush1.xpose.msra.mxu0 0.0
        %594 = vmatprep.subr.mxu0 0.0
        %595 = vmatpush1.xpose.msra.mxu0 0.0
        %596 = vmatprep.subr.mxu0 0.0
        %597 = vmatpush1.xpose.msra.mxu0 0.0
        %598 = vmatprep.subr.mxu0 0.0
        %599 = vmatpush1.xpose.msra.mxu0 0.0
        %600 = vmatprep.mubr.f32.mxu0 0.0
        %601 = vmatmul.mubr.f32.gmra.mrb[0].mxu0 %v531
        %v602 = vpop.f32.mrb[0].mxu0
        %v603 = vadd.f32 0.0, %v602
        %v604 = vpop.f32.mrb[0].mxu0
        %605 = vdwg.mxu0
        %v607 = vsel %vm377, %v368, 0
        %v610 = vsel %vm377, %v372, 0
        %612 = vmatprep.subr.mxu0 0.0
        %613 = vmatpush1.xpose.msra.mxu0 %v610
        %614 = vmatprep.subr.mxu0 0.0
        %615 = vmatpush1.xpose.msra.mxu0 0.0
        %616 = vmatprep.subr.mxu0 0.0
        %617 = vmatpush1.xpose.msra.mxu0 0.0
        %618 = vmatprep.subr.mxu0 0.0
        %619 = vmatpush1.xpose.msra.mxu0 0.0
        %620 = vmatprep.subr.mxu0 0.0
        %621 = vmatpush1.xpose.msra.mxu0 0.0
        %622 = vmatprep.subr.mxu0 0.0
        %623 = vmatpush1.xpose.msra.mxu0 0.0
        %624 = vmatprep.subr.mxu0 0.0
        %625 = vmatpush1.xpose.msra.mxu0 0.0
        %626 = vmatprep.subr.mxu0 0.0
        %627 = vmatpush1.xpose.msra.mxu0 0.0
        %628 = vmatprep.subr.mxu0 0.0
        %629 = vmatpush1.xpose.msra.mxu0 0.0
        %630 = vmatprep.subr.mxu0 0.0
        %631 = vmatpush1.xpose.msra.mxu0 0.0
        %632 = vmatprep.subr.mxu0 0.0
        %633 = vmatpush1.xpose.msra.mxu0 0.0
        %634 = vmatprep.subr.mxu0 0.0
        %635 = vmatpush1.xpose.msra.mxu0 0.0
        %636 = vmatprep.subr.mxu0 0.0
        %637 = vmatpush1.xpose.msra.mxu0 0.0
        %638 = vmatprep.subr.mxu0 0.0
        %639 = vmatpush1.xpose.msra.mxu0 0.0
        %640 = vmatprep.subr.mxu0 0.0
        %641 = vmatpush1.xpose.msra.mxu0 0.0
        %642 = vmatprep.subr.mxu0 0.0
        %643 = vmatpush1.xpose.msra.mxu0 0.0
        %644 = vmatprep.subr.mxu0 0.0
        %645 = vmatpush1.xpose.msra.mxu0 0.0
        %646 = vmatprep.subr.mxu0 0.0
        %647 = vmatpush1.xpose.msra.mxu0 0.0
        %648 = vmatprep.subr.mxu0 0.0
        %649 = vmatpush1.xpose.msra.mxu0 0.0
        %650 = vmatprep.subr.mxu0 0.0
        %651 = vmatpush1.xpose.msra.mxu0 0.0
        %652 = vmatprep.subr.mxu0 0.0
        %653 = vmatpush1.xpose.msra.mxu0 0.0
        %654 = vmatprep.subr.mxu0 0.0
        %655 = vmatpush1.xpose.msra.mxu0 0.0
        %656 = vmatprep.subr.mxu0 0.0
        %657 = vmatpush1.xpose.msra.mxu0 0.0
        %658 = vmatprep.subr.mxu0 0.0
        %659 = vmatpush1.xpose.msra.mxu0 0.0
        %660 = vmatprep.subr.mxu0 0.0
        %661 = vmatpush1.xpose.msra.mxu0 0.0
        %662 = vmatprep.subr.mxu0 0.0
        %663 = vmatpush1.xpose.msra.mxu0 0.0
        %664 = vmatprep.subr.mxu0 0.0
        %665 = vmatpush1.xpose.msra.mxu0 0.0
        %666 = vmatprep.subr.mxu0 0.0
        %667 = vmatpush1.xpose.msra.mxu0 0.0
        %668 = vmatprep.subr.mxu0 0.0
        %669 = vmatpush1.xpose.msra.mxu0 0.0
        %670 = vmatprep.subr.mxu0 0.0
        %671 = vmatpush1.xpose.msra.mxu0 0.0
        %672 = vmatprep.subr.mxu0 0.0
        %673 = vmatpush1.xpose.msra.mxu0 0.0
        %674 = vmatprep.subr.mxu0 0.0
        %675 = vmatpush1.xpose.msra.mxu0 0.0
        %676 = vmatprep.mubr.f32.mxu0 0.0
        %677 = vmatmul.mubr.f32.gmra.mrb[0].mxu0 %v607
        %v678 = vpop.f32.mrb[0].mxu0
        %v679 = vadd.f32 0.0, %v678
        %v680 = vpop.f32.mrb[0].mxu0
        %681 = vdwg.mxu0
        %vm682 = vcmask 64512
        %683 = vst.msk [vmem:[%s337] sm:$0xff] %vm682, %v451
        %684 = vst.msk [vmem:[%s337 + $0x8] sm:$0xff] %vm682, %v527
        %685 = vst.msk [vmem:[%s337 + $0x10] sm:$0xff] %vm682, %v603
        %686 = vst.msk [vmem:[%s337 + $0x18] sm:$0xff] %vm682, %v679
        %v687 = vld [vmem:[#allocation2] sm:$0xff]
        %v688 = vld [vmem:[#allocation2 + $0x8] sm:$0xff]
        %v689 = vld [vmem:[#allocation2 + $0x10] sm:$0xff]
        %v690 = vld [vmem:[#allocation2 + $0x18] sm:$0xff]
        %v691 = vsel %vm682, %v451, -inf
        %692 = vmax.xlane.f32.xlu0 %v691
        %v693 = vpop.xlane.xlu0 %692
        %v694 = vsel %vm682, %v527, -inf
        %695 = vmax.xlane.f32.xlu0 %v694
        %v696 = vpop.xlane.xlu0 %695
        %v697 = vsel %vm682, %v603, -inf
        %698 = vmax.xlane.f32.xlu0 %v697
        %v699 = vpop.xlane.xlu0 %698
        %v700 = vsel %vm682, %v679, -inf
        %701 = vmax.xlane.f32.xlu0 %v700
        %v702 = vpop.xlane.xlu0 %701
        %v703 = vmax.f32 %v687, %v693
        %v704 = vmax.f32 %v688, %v696
        %v705 = vmax.f32 %v689, %v699
        %v706 = vmax.f32 %v690, %v702
        %v707 = vsub.f32 %v687, %v703
        %v708 = vsub.f32 %v688, %v704
        %v709 = vsub.f32 %v689, %v705
        %v710 = vsub.f32 %v690, %v706
        %v711 = vmul.f32 %v707, 1.442695
        %v712 = vpow.pop %v711
        %v713 = vmul.f32 %v708, 1.442695
        %v714 = vpow.pop %v713
        %v715 = vmul.f32 %v709, 1.442695
        %v716 = vpow.pop %v715
        %v717 = vmul.f32 %v710, 1.442695
        %v718 = vpow.pop %v717
        %720 = vset.pattern.permute.xlu0 0
        %721 = vperm.xlu0 %720, %v703
        %v722 = vpop.permute.xlu0 %721
        %725 = vset.pattern.permute.xlu0 0
        %726 = vperm.xlu0 %725, %v704
        %v727 = vpop.permute.xlu0 %726
        %730 = vset.pattern.permute.xlu0 0
        %731 = vperm.xlu0 %730, %v705
        %v732 = vpop.permute.xlu0 %731
        %735 = vset.pattern.permute.xlu0 0
        %736 = vperm.xlu0 %735, %v706
        %v737 = vpop.permute.xlu0 %736
        %v739 = vsub.f32 %v451, %v722
        %v740 = vsub.f32 %v527, %v727
        %v741 = vsub.f32 %v603, %v732
        %v742 = vsub.f32 %v679, %v737
        %v743 = vmul.f32 %v739, 1.442695
        %v744 = vpow.pop %v743
        %v745 = vmul.f32 %v740, 1.442695
        %v746 = vpow.pop %v745
        %v747 = vmul.f32 %v741, 1.442695
        %v748 = vpow.pop %v747
        %v749 = vmul.f32 %v742, 1.442695
        %v750 = vpow.pop %v749
        %v751 = vld [vmem:[#allocation3] sm:$0xff]
        %v752 = vld [vmem:[#allocation3 + $0x8] sm:$0xff]
        %v753 = vld [vmem:[#allocation3 + $0x10] sm:$0xff]
        %v754 = vld [vmem:[#allocation3 + $0x18] sm:$0xff]
        %v755 = vmul.f32 %v712, %v751
        %v756 = vmul.f32 %v714, %v752
        %v757 = vmul.f32 %v716, %v753
        %v758 = vmul.f32 %v718, %v754
        %v759 = vsel %vm682, %v744, 0.0
        %760 = vadd.xlane.f32.xlu0 %v759
        %v761 = vpop.xlane.xlu0 %760
        %v762 = vsel %vm682, %v746, 0.0
        %763 = vadd.xlane.f32.xlu0 %v762
        %v764 = vpop.xlane.xlu0 %763
        %v765 = vsel %vm682, %v748, 0.0
        %766 = vadd.xlane.f32.xlu0 %v765
        %v767 = vpop.xlane.xlu0 %766
        %v768 = vsel %vm682, %v750, 0.0
        %769 = vadd.xlane.f32.xlu0 %v768
        %v770 = vpop.xlane.xlu0 %769
        %v771 = vadd.f32 %v755, %v761
        %v772 = vadd.f32 %v756, %v764
        %v773 = vadd.f32 %v757, %v767
        %v774 = vadd.f32 %v758, %v770
        %vm775 = vcmask 7168
        %776 = vst.msk [vmem:[#allocation3] sm:$0xff] %vm775, %v771
        %777 = vst.msk [vmem:[#allocation3 + $0x8] sm:$0xff] %vm775, %v772
        %778 = vst.msk [vmem:[#allocation3 + $0x10] sm:$0xff] %vm775, %v773
        %779 = vst.msk [vmem:[#allocation3 + $0x18] sm:$0xff] %vm775, %v774
        %v780 = vld [vmem:[#allocation4] sm:$0xff]
        %v781 = vld [vmem:[#allocation4 + $0x8] sm:$0xff]
        %v782 = vld [vmem:[#allocation4 + $0x10] sm:$0xff]
        %v783 = vld [vmem:[#allocation4 + $0x18] sm:$0xff]
        %785 = vset.pattern.permute.xlu0 0
        %786 = vperm.xlu0 %785, %v712
        %v787 = vpop.permute.xlu0 %786
        %790 = vset.pattern.permute.xlu0 0
        %791 = vperm.xlu0 %790, %v714
        %v792 = vpop.permute.xlu0 %791
        %795 = vset.pattern.permute.xlu0 0
        %796 = vperm.xlu0 %795, %v716
        %v797 = vpop.permute.xlu0 %796
        %800 = vset.pattern.permute.xlu0 0
        %801 = vperm.xlu0 %800, %v718
        %v802 = vpop.permute.xlu0 %801
        %v804 = vmul.f32 %v787, %v780
        %v805 = vmul.f32 %v792, %v781
        %v806 = vmul.f32 %v797, %v782
        %v807 = vmul.f32 %v802, %v783
        %v809 = vsel %vm682, %v744, 0
        %811 = vmatprep.subr.mxu0 0.0
        %812 = vmatpush1.msra.mxu0 %v373
        %813 = vmatprep.subr.mxu0 0.0
        %814 = vmatpush1.msra.mxu0 0.0
        %815 = vmatprep.subr.mxu0 0.0
        %816 = vmatpush1.msra.mxu0 0.0
        %817 = vmatprep.subr.mxu0 0.0
        %818 = vmatpush1.msra.mxu0 0.0
        %819 = vmatprep.subr.mxu0 0.0
        %820 = vmatpush1.msra.mxu0 0.0
        %821 = vmatprep.subr.mxu0 0.0
        %822 = vmatpush1.msra.mxu0 0.0
        %823 = vmatprep.subr.mxu0 0.0
        %824 = vmatpush1.msra.mxu0 0.0
        %825 = vmatprep.subr.mxu0 0.0
        %826 = vmatpush1.msra.mxu0 0.0
        %827 = vmatprep.subr.mxu0 0.0
        %828 = vmatpush1.msra.mxu0 0.0
        %829 = vmatprep.subr.mxu0 0.0
        %830 = vmatpush1.msra.mxu0 0.0
        %831 = vmatprep.subr.mxu0 0.0
        %832 = vmatpush1.msra.mxu0 0.0
        %833 = vmatprep.subr.mxu0 0.0
        %834 = vmatpush1.msra.mxu0 0.0
        %835 = vmatprep.subr.mxu0 0.0
        %836 = vmatpush1.msra.mxu0 0.0
        %837 = vmatprep.subr.mxu0 0.0
        %838 = vmatpush1.msra.mxu0 0.0
        %839 = vmatprep.subr.mxu0 0.0
        %840 = vmatpush1.msra.mxu0 0.0
        %841 = vmatprep.subr.mxu0 0.0
        %842 = vmatpush1.msra.mxu0 0.0
        %843 = vmatprep.subr.mxu0 0.0
        %844 = vmatpush1.msra.mxu0 0.0
        %845 = vmatprep.subr.mxu0 0.0
        %846 = vmatpush1.msra.mxu0 0.0
        %847 = vmatprep.subr.mxu0 0.0
        %848 = vmatpush1.msra.mxu0 0.0
        %849 = vmatprep.subr.mxu0 0.0
        %850 = vmatpush1.msra.mxu0 0.0
        %851 = vmatprep.subr.mxu0 0.0
        %852 = vmatpush1.msra.mxu0 0.0
        %853 = vmatprep.subr.mxu0 0.0
        %854 = vmatpush1.msra.mxu0 0.0
        %855 = vmatprep.subr.mxu0 0.0
        %856 = vmatpush1.msra.mxu0 0.0
        %857 = vmatprep.subr.mxu0 0.0
        %858 = vmatpush1.msra.mxu0 0.0
        %859 = vmatprep.subr.mxu0 0.0
        %860 = vmatpush1.msra.mxu0 0.0
        %861 = vmatprep.subr.mxu0 0.0
        %862 = vmatpush1.msra.mxu0 0.0
        %863 = vmatprep.subr.mxu0 0.0
        %864 = vmatpush1.msra.mxu0 0.0
        %865 = vmatprep.subr.mxu0 0.0
        %866 = vmatpush1.msra.mxu0 0.0
        %867 = vmatprep.subr.mxu0 0.0
        %868 = vmatpush1.msra.mxu0 0.0
        %869 = vmatprep.subr.mxu0 0.0
        %870 = vmatpush1.msra.mxu0 0.0
        %871 = vmatprep.subr.mxu0 0.0
        %872 = vmatpush1.msra.mxu0 0.0
        %873 = vmatprep.subr.mxu0 0.0
        %874 = vmatpush1.msra.mxu0 0.0
        %875 = vmatprep.mubr.f32.mxu0 0.0
        %876 = vmatmul.mubr.f32.gmra.mrb[0].mxu0 %v809
        %v877 = vpop.f32.mrb[0].mxu0
        %v878 = vadd.f32 0.0, %v877
        %v879 = vpop.f32.mrb[0].mxu0
        %880 = vdwg.mxu0
        %v882 = vsel %vm682, %v746, 0
        %884 = vmatprep.subr.mxu0 0.0
        %885 = vmatpush1.msra.mxu0 %v374
        %886 = vmatprep.subr.mxu0 0.0
        %887 = vmatpush1.msra.mxu0 0.0
        %888 = vmatprep.subr.mxu0 0.0
        %889 = vmatpush1.msra.mxu0 0.0
        %890 = vmatprep.subr.mxu0 0.0
        %891 = vmatpush1.msra.mxu0 0.0
        %892 = vmatprep.subr.mxu0 0.0
        %893 = vmatpush1.msra.mxu0 0.0
        %894 = vmatprep.subr.mxu0 0.0
        %895 = vmatpush1.msra.mxu0 0.0
        %896 = vmatprep.subr.mxu0 0.0
        %897 = vmatpush1.msra.mxu0 0.0
        %898 = vmatprep.subr.mxu0 0.0
        %899 = vmatpush1.msra.mxu0 0.0
        %900 = vmatprep.subr.mxu0 0.0
        %901 = vmatpush1.msra.mxu0 0.0
        %902 = vmatprep.subr.mxu0 0.0
        %903 = vmatpush1.msra.mxu0 0.0
        %904 = vmatprep.subr.mxu0 0.0
        %905 = vmatpush1.msra.mxu0 0.0
        %906 = vmatprep.subr.mxu0 0.0
        %907 = vmatpush1.msra.mxu0 0.0
        %908 = vmatprep.subr.mxu0 0.0
        %909 = vmatpush1.msra.mxu0 0.0
        %910 = vmatprep.subr.mxu0 0.0
        %911 = vmatpush1.msra.mxu0 0.0
        %912 = vmatprep.subr.mxu0 0.0
        %913 = vmatpush1.msra.mxu0 0.0
        %914 = vmatprep.subr.mxu0 0.0
        %915 = vmatpush1.msra.mxu0 0.0
        %916 = vmatprep.subr.mxu0 0.0
        %917 = vmatpush1.msra.mxu0 0.0
        %918 = vmatprep.subr.mxu0 0.0
        %919 = vmatpush1.msra.mxu0 0.0
        %920 = vmatprep.subr.mxu0 0.0
        %921 = vmatpush1.msra.mxu0 0.0
        %922 = vmatprep.subr.mxu0 0.0
        %923 = vmatpush1.msra.mxu0 0.0
        %924 = vmatprep.subr.mxu0 0.0
        %925 = vmatpush1.msra.mxu0 0.0
        %926 = vmatprep.subr.mxu0 0.0
        %927 = vmatpush1.msra.mxu0 0.0
        %928 = vmatprep.subr.mxu0 0.0
        %929 = vmatpush1.msra.mxu0 0.0
        %930 = vmatprep.subr.mxu0 0.0
        %931 = vmatpush1.msra.mxu0 0.0
        %932 = vmatprep.subr.mxu0 0.0
        %933 = vmatpush1.msra.mxu0 0.0
        %934 = vmatprep.subr.mxu0 0.0
        %935 = vmatpush1.msra.mxu0 0.0
        %936 = vmatprep.subr.mxu0 0.0
        %937 = vmatpush1.msra.mxu0 0.0
        %938 = vmatprep.subr.mxu0 0.0
        %939 = vmatpush1.msra.mxu0 0.0
        %940 = vmatprep.subr.mxu0 0.0
        %941 = vmatpush1.msra.mxu0 0.0
        %942 = vmatprep.subr.mxu0 0.0
        %943 = vmatpush1.msra.mxu0 0.0
        %944 = vmatprep.subr.mxu0 0.0
        %945 = vmatpush1.msra.mxu0 0.0
        %946 = vmatprep.subr.mxu0 0.0
        %947 = vmatpush1.msra.mxu0 0.0
        %948 = vmatprep.mubr.f32.mxu0 0.0
        %949 = vmatmul.mubr.f32.gmra.mrb[0].mxu0 %v882
        %v950 = vpop.f32.mrb[0].mxu0
        %v951 = vadd.f32 0.0, %v950
        %v952 = vpop.f32.mrb[0].mxu0
        %953 = vdwg.mxu0
        %v955 = vsel %vm682, %v748, 0
        %957 = vmatprep.subr.mxu0 0.0
        %958 = vmatpush1.msra.mxu0 %v375
        %959 = vmatprep.subr.mxu0 0.0
        %960 = vmatpush1.msra.mxu0 0.0
        %961 = vmatprep.subr.mxu0 0.0
        %962 = vmatpush1.msra.mxu0 0.0
        %963 = vmatprep.subr.mxu0 0.0
        %964 = vmatpush1.msra.mxu0 0.0
        %965 = vmatprep.subr.mxu0 0.0
        %966 = vmatpush1.msra.mxu0 0.0
        %967 = vmatprep.subr.mxu0 0.0
        %968 = vmatpush1.msra.mxu0 0.0
        %969 = vmatprep.subr.mxu0 0.0
        %970 = vmatpush1.msra.mxu0 0.0
        %971 = vmatprep.subr.mxu0 0.0
        %972 = vmatpush1.msra.mxu0 0.0
        %973 = vmatprep.subr.mxu0 0.0
        %974 = vmatpush1.msra.mxu0 0.0
        %975 = vmatprep.subr.mxu0 0.0
        %976 = vmatpush1.msra.mxu0 0.0
        %977 = vmatprep.subr.mxu0 0.0
        %978 = vmatpush1.msra.mxu0 0.0
        %979 = vmatprep.subr.mxu0 0.0
        %980 = vmatpush1.msra.mxu0 0.0
        %981 = vmatprep.subr.mxu0 0.0
        %982 = vmatpush1.msra.mxu0 0.0
        %983 = vmatprep.subr.mxu0 0.0
        %984 = vmatpush1.msra.mxu0 0.0
        %985 = vmatprep.subr.mxu0 0.0
        %986 = vmatpush1.msra.mxu0 0.0
        %987 = vmatprep.subr.mxu0 0.0
        %988 = vmatpush1.msra.mxu0 0.0
        %989 = vmatprep.subr.mxu0 0.0
        %990 = vmatpush1.msra.mxu0 0.0
        %991 = vmatprep.subr.mxu0 0.0
        %992 = vmatpush1.msra.mxu0 0.0
        %993 = vmatprep.subr.mxu0 0.0
        %994 = vmatpush1.msra.mxu0 0.0
        %995 = vmatprep.subr.mxu0 0.0
        %996 = vmatpush1.msra.mxu0 0.0
        %997 = vmatprep.subr.mxu0 0.0
        %998 = vmatpush1.msra.mxu0 0.0
        %999 = vmatprep.subr.mxu0 0.0
        %1000 = vmatpush1.msra.mxu0 0.0
        %1001 = vmatprep.subr.mxu0 0.0
        %1002 = vmatpush1.msra.mxu0 0.0
        %1003 = vmatprep.subr.mxu0 0.0
        %1004 = vmatpush1.msra.mxu0 0.0
        %1005 = vmatprep.subr.mxu0 0.0
        %1006 = vmatpush1.msra.mxu0 0.0
        %1007 = vmatprep.subr.mxu0 0.0
        %1008 = vmatpush1.msra.mxu0 0.0
        %1009 = vmatprep.subr.mxu0 0.0
        %1010 = vmatpush1.msra.mxu0 0.0
        %1011 = vmatprep.subr.mxu0 0.0
        %1012 = vmatpush1.msra.mxu0 0.0
        %1013 = vmatprep.subr.mxu0 0.0
        %1014 = vmatpush1.msra.mxu0 0.0
        %1015 = vmatprep.subr.mxu0 0.0
        %1016 = vmatpush1.msra.mxu0 0.0
        %1017 = vmatprep.subr.mxu0 0.0
        %1018 = vmatpush1.msra.mxu0 0.0
        %1019 = vmatprep.subr.mxu0 0.0
        %1020 = vmatpush1.msra.mxu0 0.0
        %1021 = vmatprep.mubr.f32.mxu0 0.0
        %1022 = vmatmul.mubr.f32.gmra.mrb[0].mxu0 %v955
        %v1023 = vpop.f32.mrb[0].mxu0
        %v1024 = vadd.f32 0.0, %v1023
        %v1025 = vpop.f32.mrb[0].mxu0
        %1026 = vdwg.mxu0
        %v1028 = vsel %vm682, %v750, 0
        %1030 = vmatprep.subr.mxu0 0.0
        %1031 = vmatpush1.msra.mxu0 %v376
        %1032 = vmatprep.subr.mxu0 0.0
        %1033 = vmatpush1.msra.mxu0 0.0
        %1034 = vmatprep.subr.mxu0 0.0
        %1035 = vmatpush1.msra.mxu0 0.0
        %1036 = vmatprep.subr.mxu0 0.0
        %1037 = vmatpush1.msra.mxu0 0.0
        %1038 = vmatprep.subr.mxu0 0.0
        %1039 = vmatpush1.msra.mxu0 0.0
        %1040 = vmatprep.subr.mxu0 0.0
        %1041 = vmatpush1.msra.mxu0 0.0
        %1042 = vmatprep.subr.mxu0 0.0
        %1043 = vmatpush1.msra.mxu0 0.0
        %1044 = vmatprep.subr.mxu0 0.0
        %1045 = vmatpush1.msra.mxu0 0.0
        %1046 = vmatprep.subr.mxu0 0.0
        %1047 = vmatpush1.msra.mxu0 0.0
        %1048 = vmatprep.subr.mxu0 0.0
        %1049 = vmatpush1.msra.mxu0 0.0
        %1050 = vmatprep.subr.mxu0 0.0
        %1051 = vmatpush1.msra.mxu0 0.0
        %1052 = vmatprep.subr.mxu0 0.0
        %1053 = vmatpush1.msra.mxu0 0.0
        %1054 = vmatprep.subr.mxu0 0.0
        %1055 = vmatpush1.msra.mxu0 0.0
        %1056 = vmatprep.subr.mxu0 0.0
        %1057 = vmatpush1.msra.mxu0 0.0
        %1058 = vmatprep.subr.mxu0 0.0
        %1059 = vmatpush1.msra.mxu0 0.0
        %1060 = vmatprep.subr.mxu0 0.0
        %1061 = vmatpush1.msra.mxu0 0.0
        %1062 = vmatprep.subr.mxu0 0.0
        %1063 = vmatpush1.msra.mxu0 0.0
        %1064 = vmatprep.subr.mxu0 0.0
        %1065 = vmatpush1.msra.mxu0 0.0
        %1066 = vmatprep.subr.mxu0 0.0
        %1067 = vmatpush1.msra.mxu0 0.0
        %1068 = vmatprep.subr.mxu0 0.0
        %1069 = vmatpush1.msra.mxu0 0.0
        %1070 = vmatprep.subr.mxu0 0.0
        %1071 = vmatpush1.msra.mxu0 0.0
        %1072 = vmatprep.subr.mxu0 0.0
        %1073 = vmatpush1.msra.mxu0 0.0
        %1074 = vmatprep.subr.mxu0 0.0
        %1075 = vmatpush1.msra.mxu0 0.0
        %1076 = vmatprep.subr.mxu0 0.0
        %1077 = vmatpush1.msra.mxu0 0.0
        %1078 = vmatprep.subr.mxu0 0.0
        %1079 = vmatpush1.msra.mxu0 0.0
        %1080 = vmatprep.subr.mxu0 0.0
        %1081 = vmatpush1.msra.mxu0 0.0
        %1082 = vmatprep.subr.mxu0 0.0
        %1083 = vmatpush1.msra.mxu0 0.0
        %1084 = vmatprep.subr.mxu0 0.0
        %1085 = vmatpush1.msra.mxu0 0.0
        %1086 = vmatprep.subr.mxu0 0.0
        %1087 = vmatpush1.msra.mxu0 0.0
        %1088 = vmatprep.subr.mxu0 0.0
        %1089 = vmatpush1.msra.mxu0 0.0
        %1090 = vmatprep.subr.mxu0 0.0
        %1091 = vmatpush1.msra.mxu0 0.0
        %1092 = vmatprep.subr.mxu0 0.0
        %1093 = vmatpush1.msra.mxu0 0.0
        %1094 = vmatprep.mubr.f32.mxu0 0.0
        %1095 = vmatmul.mubr.f32.gmra.mrb[0].mxu0 %v1028
        %v1096 = vpop.f32.mrb[0].mxu0
        %v1097 = vadd.f32 0.0, %v1096
        %v1098 = vpop.f32.mrb[0].mxu0
        %1099 = vdwg.mxu0
        %v1100 = vadd.f32 %v804, %v878
        %v1101 = vadd.f32 %v805, %v951
        %v1102 = vadd.f32 %v806, %v1024
        %v1103 = vadd.f32 %v807, %v1097
        %1104 = vst.msk [vmem:[#allocation4] sm:$0xff] %vm377, %v1100
        %1105 = vst.msk [vmem:[#allocation4 + $0x8] sm:$0xff] %vm377, %v1101
        %1106 = vst.msk [vmem:[#allocation4 + $0x10] sm:$0xff] %vm377, %v1102
        %1107 = vst.msk [vmem:[#allocation4 + $0x18] sm:$0xff] %vm377, %v1103
        %1108 = vst.msk [vmem:[#allocation2] sm:$0xff] %vm775, %v703
        %1109 = vst.msk [vmem:[#allocation2 + $0x8] sm:$0xff] %vm775, %v704
        %1110 = vst.msk [vmem:[#allocation2 + $0x10] sm:$0xff] %vm775, %v705
        %1111 = vst.msk [vmem:[#allocation2 + $0x18] sm:$0xff] %vm775, %v706
        // Predicated region
        $region49: #{tpu_custom_call.1} parent=31 // pred_check
          %p1112 = pneg %p343
        $region50: #{tpu_custom_call.1} parent=31 // pred_check_branch
          %1114 = sbr.rel (%p1112) target = $region52
        $region51: #{tpu_custom_call.1} parent=31 // pred_region
          %v1115 = vld [vmem:[#allocation4] sm:$0xff]
          %v1116 = vld [vmem:[#allocation4 + $0x8] sm:$0xff]
          %v1117 = vld [vmem:[#allocation4 + $0x10] sm:$0xff]
          %v1118 = vld [vmem:[#allocation4 + $0x18] sm:$0xff]
          %v1119 = vld [vmem:[#allocation3] sm:$0xff]
          %v1120 = vld [vmem:[#allocation3 + $0x8] sm:$0xff]
          %v1121 = vld [vmem:[#allocation3 + $0x10] sm:$0xff]
          %v1122 = vld [vmem:[#allocation3 + $0x18] sm:$0xff]
          %1124 = vset.pattern.permute.xlu0 0
          %1125 = vperm.xlu0 %1124, %v1119
          %v1126 = vpop.permute.xlu0 %1125
          %1129 = vset.pattern.permute.xlu0 0
          %1130 = vperm.xlu0 %1129, %v1120
          %v1131 = vpop.permute.xlu0 %1130
          %1134 = vset.pattern.permute.xlu0 0
          %1135 = vperm.xlu0 %1134, %v1121
          %v1136 = vpop.permute.xlu0 %1135
          %1139 = vset.pattern.permute.xlu0 0
          %1140 = vperm.xlu0 %1139, %v1122
          %v1141 = vpop.permute.xlu0 %1140
          %v1143 = vrcp.pop %v1126
          %v1144 = vmul.f32 %v1115, %v1143
          %v1145 = vrcp.pop %v1131
          %v1146 = vmul.f32 %v1116, %v1145
          %v1147 = vrcp.pop %v1136
          %v1148 = vmul.f32 %v1117, %v1147
          %v1149 = vrcp.pop %v1141
          %v1150 = vmul.f32 %v1118, %v1149
          %1151 = vst.msk [vmem:[%s330] sm:$0xff] %vm377, %v1144
          %1152 = vst.msk [vmem:[%s330 + $0x8] sm:$0xff] %vm377, %v1146
          %1153 = vst.msk [vmem:[%s330 + $0x10] sm:$0xff] %vm377, %v1148
          %1154 = vst.msk [vmem:[%s330 + $0x18] sm:$0xff] %vm377, %v1150
        $region52: #{tpu_custom_call.1} parent=31 // pred_fallthru
          _
        %s1155 = sand.u32 %s141, 1
        %s1156 = scalar_lea.sflag [#allocation7], %s1155
        %s1157 = sand.u32 %s141, 1
        %s1158 = smul.addr %s1157, 32
        %s1159 = scalar_lea.vmem [#allocation11], %s1158
        %s1160 = sand.u32 %s171, 1
        %s1161 = scalar_lea.sflag [#allocation13], %s1160
        %s1162 = sand.u32 %s171, 1
        %s1163 = smul.addr %s1162, 32
        %s1164 = scalar_lea.vmem [#allocation12], %s1163
        // Predicated region
        $region53: #{tpu_custom_call.1} parent=31 // pred_check
          %p1165 = pneg %p151
        $region54: #{tpu_custom_call.1} parent=31 // pred_check_branch
          %1167 = sbr.rel (%p1165) target = $region56
        $region55: #{tpu_custom_call.1} parent=31 // pred_region
          %s1168 = smul.u32 4, %s33
          %s1170 = ssub.s32 512, 512
          %1171 = vsyncadd %s1156, %s1170
          %s1172 = sadd.s32 %s34, %s1168
          %s1173 = smul.addr %s1172, 128
          %s1174 = scalar_lea.hbm %s3, %s1173
          %s1175 = sshll.u32 %s1159, 4
          %s1176 = int_to_ptr.vmem [resolvable:$true] %s1175
          %1181 = dma.vmem_to_hbm [thread:$0]  %s1176, 512, %s1174, %s1156, 128, 128, 8
        $region56: #{tpu_custom_call.1} parent=31 // pred_fallthru
          _
        // Predicated region
        $region57: #{tpu_custom_call.1} parent=31 // pred_check
          %p1182 = pneg %p181
        $region58: #{tpu_custom_call.1} parent=31 // pred_check_branch
          %1184 = sbr.rel (%p1182) target = $region60
        $region59: #{tpu_custom_call.1} parent=31 // pred_region
          %s1185 = smul.u32 4, %s33
          %s1187 = ssub.s32 512, 512
          %1188 = vsyncadd %s1161, %s1187
          %s1189 = sadd.s32 %s35, %s34
          %s1190 = sadd.s32 %s1189, %s1185
          %s1191 = smul.addr %s1190, 128
          %s1192 = scalar_lea.hbm %s4, %s1191
          %s1193 = sshll.u32 %s1164, 4
          %s1194 = int_to_ptr.vmem [resolvable:$true] %s1193
          %1199 = dma.vmem_to_hbm [thread:$0]  %s1194, 512, %s1192, %s1161, 128, 128, 8
        $region60: #{tpu_custom_call.1} parent=31 // pred_fallthru
          _
      $region32: #{tpu_custom_call.1} parent=5 // pred_fallthru
        _
      %p1200 = scmp.le.s32.totalorder 2, %s23
      // Predicated region
      $region61: #{tpu_custom_call.1} parent=5 // pred_check
        %p1201 = pneg %p1200
      $region62: #{tpu_custom_call.1} parent=5 // pred_check_branch
        %1203 = sbr.rel (%p1201) target = $region64
      $region63: #{tpu_custom_call.1} parent=5 // pred_region
        %s1204 = ssub.s32 %s23, 2
        // Predicated region
        $region65: #{tpu_custom_call.1} parent=63 // pred_check
          %p1205 = pneg %p157
        $region66: #{tpu_custom_call.1} parent=63 // pred_check_branch
          %1207 = sbr.rel (%p1205) target = $region68
        $region67: #{tpu_custom_call.1} parent=63 // pred_region
          %s1208 = sand.u32 %s142, 1
          %s1209 = scalar_lea.sflag [#allocation7], %s1208
          %s1210 = sand.u32 %s142, 1
          %s1211 = smul.addr %s1210, 32
          %s1212 = scalar_lea.vmem [#allocation11], %s1211
          %1213 = dma.done %s1209, 512
        $region68: #{tpu_custom_call.1} parent=63 // pred_fallthru
          _
        // Predicated region
        $region69: #{tpu_custom_call.1} parent=63 // pred_check
          %p1214 = pneg %p187
        $region70: #{tpu_custom_call.1} parent=63 // pred_check_branch
          %1216 = sbr.rel (%p1214) target = $region72
        $region71: #{tpu_custom_call.1} parent=63 // pred_region
          %s1217 = sand.u32 %s172, 1
          %s1218 = scalar_lea.sflag [#allocation13], %s1217
          %s1219 = sand.u32 %s172, 1
          %s1220 = smul.addr %s1219, 32
          %s1221 = scalar_lea.vmem [#allocation12], %s1220
          %1222 = dma.done %s1218, 512
        $region72: #{tpu_custom_call.1} parent=63 // pred_fallthru
          _
      $region64: #{tpu_custom_call.1} parent=5 // pred_fallthru
        _
    $region6: #{tpu_custom_call.1} parent=1 // loop_footer
      %s27 = sadd.s32 1, %s23
    $region7: #{tpu_custom_call.1} parent=1 // loop_footer_branch
      %22 = sbr.rel target = $region3
    $region8: #{tpu_custom_call.1} parent=1 // loop_exit
      _
    %1223 = vsyncpa [#allocation6], 1
    %s1224 = scalar_lea.sflag [#allocation6], 1
    %1225 = vsyncpa %s1224, 1
    %1226 = vsyncpa [#allocation9], 1
    %s1227 = scalar_lea.sflag [#allocation9], 1
    %1228 = vsyncpa %s1227, 1
    %1229 = vsyncpa [#allocation7], 1
    %s1230 = scalar_lea.sflag [#allocation7], 1
    %1231 = vsyncpa %s1230, 1
    %1232 = vsyncpa [#allocation13], 1
    %s1233 = scalar_lea.sflag [#allocation13], 1
    %1234 = vsyncpa %s1233, 1

</llo_original>
